<compile_context>
chip_gen: v7x
topology: tpu7x:2x2x1
jax: 0.10.0
libtpu: 0.0.40
codegen_flags: <defaults>
</compile_context>

<pallas_src>
import jax
import jax.numpy as jnp
import numpy as np
from jax.experimental import pallas as pl
from jax.experimental.pallas import tpu as pltpu


def _round_up(x, m):
    return (x + m - 1) // m * m


def decoder_kernel(emb_ref, hid0_ref, enc_ref, mask_ref,
                   wa_h_ref, wa_e_ref, wgru_ref, wfc_ref, bias_ref,
                   out_ref, h_scr, ep_scr):
    t = pl.program_id(0)
    B, S, K2 = enc_ref.shape
    H = hid0_ref.shape[1]
    O = wfc_ref.shape[1]
    H3 = wgru_ref.shape[1] // 2
    bf16 = jnp.bfloat16

    # ---- one-time work (t == 0): seed the carried hidden state and cache the
    # encoder-side attention projection (constant across decode steps).
    @pl.when(t == 0)
    def _init():
        h_scr[...] = hid0_ref[...]
        enc2 = enc_ref[...].reshape(B * S, K2)                      # one-time, tiny
        ep = jnp.dot(enc2, wa_e_ref[...],
                     preferred_element_type=jnp.float32)            # [B*S, H]
        ep_scr[...] = ep.reshape(B, S, H) + bias_ref[0:1, 0:H]      # + attn bias

    hid = h_scr[...]                                                # [B,H] f32 carried state
    emb = emb_ref[...]                                              # [B,E] bf16
    enc_f = enc_ref[...].astype(jnp.float32)                        # [B,S,2EH]

    # ---------------- additive attention ----------------
    e_hid = jnp.dot(hid.astype(bf16), wa_h_ref[...],
                    preferred_element_type=jnp.float32)             # [B,H]
    energy = jnp.tanh(ep_scr[...] + e_hid[:, None, :])              # [B,S,H] f32
    v = bias_ref[1:2, 0:H]                                          # [1,H]
    scores = jnp.sum(energy * v, axis=2)                            # [B,S] (lane reduce)
    scores = jnp.where(mask_ref[...] == 0.0, -1e10, scores)

    m = jnp.max(scores, axis=1, keepdims=True)
    ex = jnp.exp(scores - m)
    a = ex * pl.reciprocal(jnp.sum(ex, axis=1, keepdims=True), approx=True)   # [B,S]

    # weighted context: VPU multiply + reduce over S (no 1-row batched matmuls)
    weighted = jnp.sum(a[:, :, None] * enc_f, axis=1)               # [B,2EH] f32

    # ---------------- single-step GRU: both matmuls fused into one dot ----------------
    x = jnp.concatenate([emb, weighted.astype(bf16), hid.astype(bf16)], axis=1)   # [B, E+2EH+H]
    g = jnp.dot(x, wgru_ref[...], preferred_element_type=jnp.float32) \
        + bias_ref[2:3, 0:2 * H3]                                   # [B, 6H] = [gi | gh]
    gi = g[:, 0:H3]
    gh = g[:, H3:2 * H3]
    r = jax.nn.sigmoid(gi[:, 0:H] + gh[:, 0:H])
    z = jax.nn.sigmoid(gi[:, H:2 * H] + gh[:, H:2 * H])
    n = jnp.tanh(gi[:, 2 * H:H3] + r * gh[:, 2 * H:H3])
    h_new = (1.0 - z) * n + z * hid                                 # [B,H] f32
    h_scr[...] = h_new                                              # carry to next step
    # (single time-step GRU => output == new hidden, matching the torch assert)

    # ---------------- output projection: one fused [B,128]x[128,O] dot ----------------
    y = jnp.concatenate([h_new.astype(bf16), weighted.astype(bf16), emb], axis=1)
    pred = jnp.dot(y, wfc_ref[...], preferred_element_type=jnp.float32) \
        + bias_ref[3:4, 0:O]                                        # [B,O]

    # ---------------- lane-dense packed store: [pred | h_new | attn | pad] ----------------
    pad = out_ref.shape[1] - (O + H + S)
    parts = [pred, h_new, a]
    if pad > 0:
        parts.append(jnp.zeros((B, pad), jnp.float32))
    out_ref[...] = jnp.concatenate(parts, axis=1)


def prepare_decoder_params(params):
    """One-time weight preparation, hoisted OUT of the decode loop.

    Builds the fused/transposed bf16 weights (MXU operands) and packs all tiny
    bias/vector params into a single f32 slab (one DMA instead of five).
    """
    f32, bf16 = jnp.float32, jnp.bfloat16
    H = params['gru_Whh'].shape[1]
    O, _E = params['embedding'].shape
    attn_W = jnp.asarray(params['attn_W'], f32)           # [H, H+2EH], cat order (hidden, enc)
    wih_t = jnp.asarray(params['gru_Wih'], f32).T         # [E+2EH, 3H], cat order (emb, weighted)
    whh_t = jnp.asarray(params['gru_Whh'], f32).T         # [H, 3H]
    Kx = wih_t.shape[0]

    # fused GRU weight: cat(emb, weighted, hid) @ blockdiag(Wih^T, Whh^T) -> [gi | gh]
    w_gru = jnp.zeros((Kx + H, 6 * H), f32)
    w_gru = w_gru.at[:Kx, :3 * H].set(wih_t)
    w_gru = w_gru.at[Kx:, 3 * H:].set(whh_t)

    # all tiny bias / vector params packed into one (8, max(6H,O)) f32 slab
    Wb = max(6 * H, O)
    bias = jnp.zeros((8, Wb), f32)
    bias = bias.at[0, :H].set(jnp.asarray(params['attn_b'], f32))       # attention bias
    bias = bias.at[1, :H].set(jnp.asarray(params['attn_v'], f32)[0])    # attention v
    bias = bias.at[2, :3 * H].set(jnp.asarray(params['gru_bih'], f32))
    bias = bias.at[2, 3 * H:6 * H].set(jnp.asarray(params['gru_bhh'], f32))
    bias = bias.at[3, :O].set(jnp.asarray(params['fc_b'], f32))

    return {
        'embedding': jnp.asarray(params['embedding'], bf16),            # [O, E]
        'wa_h': attn_W[:, :H].T.astype(bf16),                           # [H, H]
        'wa_e': attn_W[:, H:].T.astype(bf16),                           # [2EH, H]
        'w_gru': w_gru.astype(bf16),                                    # [E+2EH+H, 6H]
        'wfc': jnp.asarray(params['fc_W'], f32).T.astype(bf16),         # [H+2EH+E, O] (cat: out, weighted, emb)
        'bias': bias,                                                   # [8, max(6H,O)] f32
    }


def decoder_decode(tokens, hidden0, enc_bf, mask, prep):
    """Run T teacher-forced decode steps in ONE pallas_call (grid=(T,)).

    tokens  [T, B] int32     hidden0 [B, H] f32
    enc_bf  [B, S, 2EH]      mask    [B, S] (1 = valid, 0 = pad)
    Returns pred [T,B,O], hidden [T,B,H], attn [T,B,S] (per step).
    """
    T, B = tokens.shape
    S, K2 = enc_bf.shape[1], enc_bf.shape[2]
    H = hidden0.shape[1]
    O = prep['wfc'].shape[1]
    Kg, H6 = prep['w_gru'].shape
    Kf = prep['wfc'].shape[0]
    Wb = prep['bias'].shape[1]

    # embedding lookup for all T steps at once (eval-mode dropout == identity)
    emb_all = jnp.take(prep['embedding'], tokens, axis=0)               # [T, B, E] bf16
    E = emb_all.shape[2]
    W_out = _round_up(O + H + S, 128)

    grid_spec = pltpu.PrefetchScalarGridSpec(
        num_scalar_prefetch=0,
        grid=(T,),
        in_specs=[
            pl.BlockSpec((None, B, E), lambda t: (t, 0, 0)),     # per-step embedding
            pl.BlockSpec((B, H),       lambda t: (0, 0)),        # initial hidden (read at t==0)
            pl.BlockSpec((B, S, K2),   lambda t: (0, 0, 0)),     # encoder outputs (VMEM-resident)
            pl.BlockSpec((B, S),       lambda t: (0, 0)),        # mask (resident)
            pl.BlockSpec((H, H),       lambda t: (0, 0)),        # W_attn (hidden part)
            pl.BlockSpec((K2, H),      lambda t: (0, 0)),        # W_attn (encoder part)
            pl.BlockSpec((Kg, H6),     lambda t: (0, 0)),        # fused GRU weight
            pl.BlockSpec((Kf, O),      lambda t: (0, 0)),        # fc weight
            pl.BlockSpec((8, Wb),      lambda t: (0, 0)),        # packed biases
        ],
        out_specs=pl.BlockSpec((None, B, W_out), lambda t: (t, 0, 0)),
        scratch_shapes=[
            pltpu.VMEM((B, H), jnp.float32),       # carried GRU hidden state
            pltpu.VMEM((B, S, H), jnp.float32),    # cached enc @ Wa_enc + b_a
        ],
    )

    packed = pl.pallas_call(
        decoder_kernel,
        out_shape=jax.ShapeDtypeStruct((T, B, W_out), jnp.float32),
        grid_spec=grid_spec,
        compiler_params=pltpu.CompilerParams(
            dimension_semantics=("arbitrary",),          # sequential: state carried across steps
            vmem_limit_bytes=32 * 1024 * 1024),
    )(emb_all,
      hidden0.astype(jnp.float32),
      enc_bf.astype(jnp.bfloat16),
      mask.astype(jnp.float32),
      prep['wa_h'], prep['wa_e'], prep['w_gru'], prep['wfc'], prep['bias'])

    pred = packed[:, :, :O]
    h_seq = packed[:, :, O:O + H]
    a_seq = packed[:, :, O + H:O + H + S]
    return pred, h_seq, a_seq


def decoder_forward(tokens, hidden, encoder_outputs, mask, prep):
    """Single decode step matching Decoder.forward (encoder_outputs in torch layout [S,B,2EH])."""
    enc_bf = jnp.transpose(encoder_outputs, (1, 0, 2))
    pred, h, a = decoder_decode(tokens[None, :], hidden, enc_bf, mask, prep)
    return pred[0], h[0], a[0]


def decoder_reference_step(tok, hidden, encoder_outputs, mask, params):
    """Pure-JAX reference mirroring the PyTorch forward exactly (torch layouts, f32)."""
    H = hidden.shape[1]
    embedded = jnp.take(params['embedding'], tok, axis=0)                     # [B, E]
    enc_bf = jnp.transpose(encoder_outputs, (1, 0, 2))                        # [B, S, 2EH]
    B, S, _ = enc_bf.shape
    hid_rep = jnp.broadcast_to(hidden[:, None, :], (B, S, H))
    energy = jnp.tanh(jnp.concatenate([hid_rep, enc_bf], axis=2)
                      @ params['attn_W'].T + params['attn_b'])
    scores = (energy @ params['attn_v'].T)[..., 0]
    scores = jnp.where(mask == 0, -1e10, scores)
    a = jax.nn.softmax(scores, axis=1)
    weighted = jnp.einsum('bs,bsk->bk', a, enc_bf)
    x = jnp.concatenate([embedded, weighted], axis=1)
    gi = x @ params['gru_Wih'].T + params['gru_bih']
    gh = hidden @ params['gru_Whh'].T + params['gru_bhh']
    r = jax.nn.sigmoid(gi[:, :H] + gh[:, :H])
    z = jax.nn.sigmoid(gi[:, H:2 * H] + gh[:, H:2 * H])
    n = jnp.tanh(gi[:, 2 * H:] + r * gh[:, 2 * H:])
    h_new = (1.0 - z) * n + z * hidden
    pred = (jnp.concatenate([h_new, weighted, embedded], axis=1)
            @ params['fc_W'].T + params['fc_b'])
    return pred, h_new, a


if __name__ == "__main__":
    B, S, T = 2, 8, 4              # batch, source length, decode steps
    E, EH, H, O = 32, 32, 32, 64   # emb_dim, enc_hid_dim, dec_hid_dim, output_dim (vocab)

    key = jax.random.PRNGKey(0)
    ks = jax.random.split(key, 16)

    def uni(k, shape, fan_in):
        s = 1.0 / np.sqrt(fan_in)
        return jax.random.uniform(k, shape, jnp.float32, -s, s)

    params = {
        'embedding': jax.random.normal(ks[0], (O, E), jnp.float32) * 0.1,
        'attn_W':   uni(ks[1], (H, 2 * EH + H), 2 * EH + H),
        'attn_b':   uni(ks[2], (H,), 2 * EH + H),
        'attn_v':   uni(ks[3], (1, H), H),
        'gru_Wih':  uni(ks[4], (3 * H, 2 * EH + E), H),
        'gru_Whh':  uni(ks[5], (3 * H, H), H),
        'gru_bih':  uni(ks[6], (3 * H,), H),
        'gru_bhh':  uni(ks[7], (3 * H,), H),
        'fc_W':     uni(ks[8], (O, 2 * EH + H + E), 2 * EH + H + E),
        'fc_b':     uni(ks[9], (O,), 2 * EH + H + E),
    }

    tokens = jax.random.randint(ks[10], (T, B), 0, O, dtype=jnp.int32)        # teacher-forced ids
    hidden0 = jax.random.normal(ks[11], (B, H), jnp.float32)
    encoder_outputs = jax.random.normal(ks[12], (S, B, 2 * EH), jnp.float32)  # torch layout [S,B,2EH]
    lengths = jnp.array([S, S - 3], dtype=jnp.int32)                          # second sequence padded
    mask = (jnp.arange(S)[None, :] < lengths[:, None]).astype(jnp.float32)

    # ---- one-time (per model / per sequence) preparation, hoisted out of the loop ----
    prep = prepare_decoder_params(params)
    enc_bf = jnp.transpose(encoder_outputs, (1, 0, 2))                        # [B,S,2EH], once per sequence

    # ---- T-step decode: ONE pallas_call, weights/enc resident, hidden in scratch ----
    decode = jax.jit(decoder_decode)
    pred, h_seq, a_seq = decode(tokens, hidden0, enc_bf, mask, prep)
    jax.block_until_ready((pred, h_seq, a_seq))

    # pure-JAX reference: apply the per-step reference T times, carrying hidden
    pred_r, h_r, a_r = [], [], []
    h = hidden0
    for step in range(T):
        p, h, a = decoder_reference_step(tokens[step], h, encoder_outputs, mask, params)
        pred_r.append(p); h_r.append(h); a_r.append(a)
    pred_r, h_r, a_r = jnp.stack(pred_r), jnp.stack(h_r), jnp.stack(a_r)

    tol = dict(rtol=2e-2, atol=2e-2)   # bf16 MXU operands (f32 accumulation)
    np.testing.assert_allclose(np.asarray(pred),  np.asarray(pred_r), **tol)
    np.testing.assert_allclose(np.asarray(h_seq), np.asarray(h_r),    **tol)
    np.testing.assert_allclose(np.asarray(a_seq), np.asarray(a_r),    **tol)

    # ---- single-step API (exact Decoder.forward signature/semantics) ----
    step_fn = jax.jit(decoder_forward)
    p1, h1, a1 = step_fn(tokens[0], hidden0, encoder_outputs, mask, prep)
    jax.block_until_ready((p1, h1, a1))
    np.testing.assert_allclose(np.asarray(p1), np.asarray(pred_r[0]), **tol)
    np.testing.assert_allclose(np.asarray(a1), np.asarray(a_r[0]),    **tol)

    print("KERNEL_OK")
</pallas_src>

<mosaic_0001>
module attributes {stable_mosaic.version = 11 : i64} {
  func.func @decoder_kernel(%arg0: i32, %arg1: memref<1x2x32xbf16, #tpu.memory_space<vmem>>, %arg2: memref<2x32xf32, #tpu.memory_space<vmem>>, %arg3: memref<2x8x64xbf16, #tpu.memory_space<vmem>>, %arg4: memref<2x8xf32, #tpu.memory_space<vmem>>, %arg5: memref<32x32xbf16, #tpu.memory_space<vmem>>, %arg6: memref<64x32xbf16, #tpu.memory_space<vmem>>, %arg7: memref<128x192xbf16, #tpu.memory_space<vmem>>, %arg8: memref<128x64xbf16, #tpu.memory_space<vmem>>, %arg9: memref<8x192xf32, #tpu.memory_space<vmem>>, %arg10: memref<1x2x128xf32, #tpu.memory_space<vmem>>, %arg11: memref<2x32xf32, #tpu.memory_space<vmem>>, %arg12: memref<2x8x32xf32, #tpu.memory_space<vmem>>) attributes {dimension_semantics = [#tpu.dimension_semantics<arbitrary>], iteration_bounds = array<i64: 4>, scalar_prefetch = 0 : i64, scratch_operands = 2 : i64, tpu.core_type = #tpu.core_type<tc>, window_params = [{transform_indices = @transform_0, window_bounds = array<i64: 1, 2, 32>}, {pipeline_mode = #tpu.pipeline_mode<synchronous>, transform_indices = @transform_1, window_bounds = array<i64: 2, 32>}, {pipeline_mode = #tpu.pipeline_mode<synchronous>, transform_indices = @transform_2, window_bounds = array<i64: 2, 8, 64>}, {pipeline_mode = #tpu.pipeline_mode<synchronous>, transform_indices = @transform_3, window_bounds = array<i64: 2, 8>}, {pipeline_mode = #tpu.pipeline_mode<synchronous>, transform_indices = @transform_4, window_bounds = array<i64: 32, 32>}, {pipeline_mode = #tpu.pipeline_mode<synchronous>, transform_indices = @transform_5, window_bounds = array<i64: 64, 32>}, {pipeline_mode = #tpu.pipeline_mode<synchronous>, transform_indices = @transform_6, window_bounds = array<i64: 128, 192>}, {pipeline_mode = #tpu.pipeline_mode<synchronous>, transform_indices = @transform_7, window_bounds = array<i64: 128, 64>}, {pipeline_mode = #tpu.pipeline_mode<synchronous>, transform_indices = @transform_8, window_bounds = array<i64: 8, 192>}, {transform_indices = @transform_9, window_bounds = array<i64: 1, 2, 128>}]} {
    %c0_i32 = arith.constant 0 : i32
    %0 = arith.cmpi eq, %arg0, %c0_i32 : i32
    %1 = arith.extui %0 : i1 to i32
    %c0_i32_0 = arith.constant 0 : i32
    %2 = arith.cmpi ne, %1, %c0_i32_0 : i32
    scf.if %2 {
      %c0_39 = arith.constant 0 : index
      %c0_40 = arith.constant 0 : index
      %90 = vector.load %arg2[%c0_39, %c0_40] : memref<2x32xf32, #tpu.memory_space<vmem>>, vector<2x32xf32>
      %c0_41 = arith.constant 0 : index
      %c0_42 = arith.constant 0 : index
      %91 = vector.load %arg11[%c0_41, %c0_42] : memref<2x32xf32, #tpu.memory_space<vmem>>, vector<2x32xf32>
      tpu.vector_store %arg11[%c0_41, %c0_42], %90 {strides = array<i32>} : memref<2x32xf32, #tpu.memory_space<vmem>>, vector<2x32xf32>,
      %c0_43 = arith.constant 0 : index
      %c0_44 = arith.constant 0 : index
      %c0_45 = arith.constant 0 : index
      %92 = vector.load %arg3[%c0_43, %c0_44, %c0_45] : memref<2x8x64xbf16, #tpu.memory_space<vmem>>, vector<2x8x64xbf16>
      %93 = vector.shape_cast %92 : vector<2x8x64xbf16> to vector<16x64xbf16>
      %c0_46 = arith.constant 0 : index
      %c0_47 = arith.constant 0 : index
      %94 = vector.load %arg6[%c0_46, %c0_47] : memref<64x32xbf16, #tpu.memory_space<vmem>>, vector<64x32xbf16>
      %cst_48 = arith.constant dense<0.000000e+00> : vector<16x32xf32>
      %95 = tpu.matmul %93, %94, %cst_48 {dimension_numbers = #tpu.dot_dimension_numbers<[1], [0], [0], [1], [0, 0, 1, 1], [], []>} : vector<16x64xbf16>, vector<64x32xbf16>, vector<16x32xf32> -> vector<16x32xf32>
      %96 = vector.shape_cast %95 : vector<16x32xf32> to vector<2x8x32xf32>
      %c0_49 = arith.constant 0 : index
      %c0_50 = arith.constant 0 : index
      %97 = vector.load %arg9[%c0_49, %c0_50] : memref<8x192xf32, #tpu.memory_space<vmem>>, vector<1x32xf32>
      %98 = vector.shape_cast %97 : vector<1x32xf32> to vector<1x1x32xf32>
      %99 = vector.broadcast %98 : vector<1x1x32xf32> to vector<2x8x32xf32>
      %100 = arith.addf %96, %99 : vector<2x8x32xf32>
      %c0_51 = arith.constant 0 : index
      %c0_52 = arith.constant 0 : index
      %c0_53 = arith.constant 0 : index
      %101 = vector.load %arg12[%c0_51, %c0_52, %c0_53] : memref<2x8x32xf32, #tpu.memory_space<vmem>>, vector<2x8x32xf32>
      tpu.vector_store %arg12[%c0_51, %c0_52, %c0_53], %100 {strides = array<i32>} : memref<2x8x32xf32, #tpu.memory_space<vmem>>, vector<2x8x32xf32>,
    } else {
    }
    %c0 = arith.constant 0 : index
    %c0_1 = arith.constant 0 : index
    %3 = vector.load %arg11[%c0, %c0_1] : memref<2x32xf32, #tpu.memory_space<vmem>>, vector<2x32xf32>
    %c0_2 = arith.constant 0 : index
    %c0_3 = arith.constant 0 : index
    %c0_4 = arith.constant 0 : index
    %4 = vector.load %arg1[%c0_2, %c0_3, %c0_4] : memref<1x2x32xbf16, #tpu.memory_space<vmem>>, vector<1x2x32xbf16>
    %5 = vector.shape_cast %4 : vector<1x2x32xbf16> to vector<2x32xbf16>
    %c0_5 = arith.constant 0 : index
    %c0_6 = arith.constant 0 : index
    %c0_7 = arith.constant 0 : index
    %6 = vector.load %arg3[%c0_5, %c0_6, %c0_7] : memref<2x8x64xbf16, #tpu.memory_space<vmem>>, vector<2x8x64xbf16>
    %7 = arith.extf %6 : vector<2x8x64xbf16> to vector<2x8x64xf32>
    %8 = arith.truncf %3 : vector<2x32xf32> to vector<2x32xbf16>
    %c0_8 = arith.constant 0 : index
    %c0_9 = arith.constant 0 : index
    %9 = vector.load %arg5[%c0_8, %c0_9] : memref<32x32xbf16, #tpu.memory_space<vmem>>, vector<32x32xbf16>
    %cst = arith.constant dense<0.000000e+00> : vector<2x32xf32>
    %10 = tpu.matmul %8, %9, %cst {dimension_numbers = #tpu.dot_dimension_numbers<[1], [0], [0], [1], [0, 0, 1, 1], [], []>} : vector<2x32xbf16>, vector<32x32xbf16>, vector<2x32xf32> -> vector<2x32xf32>
    %c0_10 = arith.constant 0 : index
    %c0_11 = arith.constant 0 : index
    %c0_12 = arith.constant 0 : index
    %11 = vector.load %arg12[%c0_10, %c0_11, %c0_12] : memref<2x8x32xf32, #tpu.memory_space<vmem>>, vector<2x8x32xf32>
    %12 = vector.shape_cast %10 : vector<2x32xf32> to vector<2x1x32xf32>
    %13 = vector.broadcast %12 : vector<2x1x32xf32> to vector<2x8x32xf32>
    %14 = arith.addf %11, %13 : vector<2x8x32xf32>
    %15 = math.tanh %14 : vector<2x8x32xf32>
    %c1 = arith.constant 1 : index
    %c0_13 = arith.constant 0 : index
    %16 = vector.load %arg9[%c1, %c0_13] : memref<8x192xf32, #tpu.memory_space<vmem>>, vector<1x32xf32>
    %17 = vector.shape_cast %16 : vector<1x32xf32> to vector<1x1x32xf32>
    %18 = vector.broadcast %17 : vector<1x1x32xf32> to vector<2x8x32xf32>
    %19 = arith.mulf %15, %18 : vector<2x8x32xf32>
    %cst_14 = arith.constant dense<0.000000e+00> : vector<2x8xf32>
    %20 = vector.multi_reduction <add>, %19, %cst_14 [2] : vector<2x8x32xf32> to vector<2x8xf32>
    %c0_15 = arith.constant 0 : index
    %c0_16 = arith.constant 0 : index
    %21 = vector.load %arg4[%c0_15, %c0_16] : memref<2x8xf32, #tpu.memory_space<vmem>>, vector<2x8xf32>
    %cst_17 = arith.constant 0.000000e+00 : f32
    %22 = vector.broadcast %cst_17 : f32 to vector<2x8xf32>
    %23 = arith.cmpf oeq, %21, %22 : vector<2x8xf32>
    %cst_18 = arith.constant -1.000000e+10 : f32
    %24 = vector.broadcast %cst_18 : f32 to vector<2x8xf32>
    %25 = arith.select %23, %24, %20 : vector<2x8xi1>, vector<2x8xf32>
    %cst_19 = arith.constant dense<0xFF800000> : vector<2xf32>
    %26 = vector.multi_reduction <maximumf>, %25, %cst_19 [1] : vector<2x8xf32> to vector<2xf32>
    %27 = vector.shape_cast %26 : vector<2xf32> to vector<2x1xf32>
    %28 = vector.broadcast %27 : vector<2x1xf32> to vector<2x8xf32>
    %29 = arith.subf %25, %28 : vector<2x8xf32>
    %30 = math.exp %29 : vector<2x8xf32>
    %cst_20 = arith.constant dense<0.000000e+00> : vector<2xf32>
    %31 = vector.multi_reduction <add>, %30, %cst_20 [1] : vector<2x8xf32> to vector<2xf32>
    %32 = vector.shape_cast %31 : vector<2xf32> to vector<2x1xf32>
    %33 = tpu.reciprocal %32 {approx = true} : vector<2x1xf32> -> vector<2x1xf32>
    %34 = vector.broadcast %33 : vector<2x1xf32> to vector<2x8xf32>
    %35 = arith.mulf %30, %34 : vector<2x8xf32>
    %36 = vector.shape_cast %35 : vector<2x8xf32> to vector<2x8x1xf32>
    %37 = vector.broadcast %36 : vector<2x8x1xf32> to vector<2x8x64xf32>
    %38 = arith.mulf %37, %7 : vector<2x8x64xf32>
    %cst_21 = arith.constant dense<0.000000e+00> : vector<2x64xf32>
    %39 = vector.multi_reduction <add>, %38, %cst_21 [1] : vector<2x8x64xf32> to vector<2x64xf32>
    %40 = arith.truncf %39 : vector<2x64xf32> to vector<2x64xbf16>
    %41 = arith.truncf %3 : vector<2x32xf32> to vector<2x32xbf16>
    %42 = tpu.concatenate %5, %40, %41 in 1 : vector<2x32xbf16>, vector<2x64xbf16>, vector<2x32xbf16> -> vector<2x128xbf16>
    %c0_22 = arith.constant 0 : index
    %c0_23 = arith.constant 0 : index
    %43 = vector.load %arg7[%c0_22, %c0_23] : memref<128x192xbf16, #tpu.memory_space<vmem>>, vector<128x192xbf16>
    %cst_24 = arith.constant dense<0.000000e+00> : vector<2x192xf32>
    %44 = tpu.matmul %42, %43, %cst_24 {dimension_numbers = #tpu.dot_dimension_numbers<[1], [0], [0], [1], [0, 0, 1, 1], [], []>} : vector<2x128xbf16>, vector<128x192xbf16>, vector<2x192xf32> -> vector<2x192xf32>
    %c2 = arith.constant 2 : index
    %c0_25 = arith.constant 0 : index
    %45 = vector.load %arg9[%c2, %c0_25] : memref<8x192xf32, #tpu.memory_space<vmem>>, vector<1x192xf32>
    %46 = vector.broadcast %45 : vector<1x192xf32> to vector<2x192xf32>
    %47 = arith.addf %44, %46 : vector<2x192xf32>
    %48 = vector.extract_strided_slice %47 {offsets = [0, 0], sizes = [2, 96], strides = [1, 1]} : vector<2x192xf32> to vector<2x96xf32>
    %49 = vector.extract_strided_slice %47 {offsets = [0, 96], sizes = [2, 96], strides = [1, 1]} : vector<2x192xf32> to vector<2x96xf32>
    %50 = vector.extract_strided_slice %48 {offsets = [0, 0], sizes = [2, 32], strides = [1, 1]} : vector<2x96xf32> to vector<2x32xf32>
    %51 = vector.extract_strided_slice %49 {offsets = [0, 0], sizes = [2, 32], strides = [1, 1]} : vector<2x96xf32> to vector<2x32xf32>
    %52 = arith.addf %50, %51 : vector<2x32xf32>
    %53 = arith.negf %52 : vector<2x32xf32>
    %54 = math.exp %53 : vector<2x32xf32>
    %cst_26 = arith.constant 1.000000e+00 : f32
    %55 = vector.broadcast %cst_26 : f32 to vector<2x32xf32>
    %56 = arith.addf %55, %54 : vector<2x32xf32>
    %57 = arith.divf %55, %56 : vector<2x32xf32>
    %58 = vector.extract_strided_slice %48 {offsets = [0, 32], sizes = [2, 32], strides = [1, 1]} : vector<2x96xf32> to vector<2x32xf32>
    %59 = vector.extract_strided_slice %49 {offsets = [0, 32], sizes = [2, 32], strides = [1, 1]} : vector<2x96xf32> to vector<2x32xf32>
    %60 = arith.addf %58, %59 : vector<2x32xf32>
    %61 = arith.negf %60 : vector<2x32xf32>
    %62 = math.exp %61 : vector<2x32xf32>
    %cst_27 = arith.constant 1.000000e+00 : f32
    %63 = vector.broadcast %cst_27 : f32 to vector<2x32xf32>
    %64 = arith.addf %63, %62 : vector<2x32xf32>
    %65 = arith.divf %63, %64 : vector<2x32xf32>
    %66 = vector.extract_strided_slice %48 {offsets = [0, 64], sizes = [2, 32], strides = [1, 1]} : vector<2x96xf32> to vector<2x32xf32>
    %67 = vector.extract_strided_slice %49 {offsets = [0, 64], sizes = [2, 32], strides = [1, 1]} : vector<2x96xf32> to vector<2x32xf32>
    %68 = arith.mulf %57, %67 : vector<2x32xf32>
    %69 = arith.addf %66, %68 : vector<2x32xf32>
    %70 = math.tanh %69 : vector<2x32xf32>
    %cst_28 = arith.constant 1.000000e+00 : f32
    %71 = vector.broadcast %cst_28 : f32 to vector<2x32xf32>
    %72 = arith.subf %71, %65 : vector<2x32xf32>
    %73 = arith.mulf %72, %70 : vector<2x32xf32>
    %74 = arith.mulf %65, %3 : vector<2x32xf32>
    %75 = arith.addf %73, %74 : vector<2x32xf32>
    %c0_29 = arith.constant 0 : index
    %c0_30 = arith.constant 0 : index
    %76 = vector.load %arg11[%c0_29, %c0_30] : memref<2x32xf32, #tpu.memory_space<vmem>>, vector<2x32xf32>
    tpu.vector_store %arg11[%c0_29, %c0_30], %75 {strides = array<i32>} : memref<2x32xf32, #tpu.memory_space<vmem>>, vector<2x32xf32>,
    %77 = arith.truncf %75 : vector<2x32xf32> to vector<2x32xbf16>
    %78 = arith.truncf %39 : vector<2x64xf32> to vector<2x64xbf16>
    %79 = tpu.concatenate %77, %78, %5 in 1 : vector<2x32xbf16>, vector<2x64xbf16>, vector<2x32xbf16> -> vector<2x128xbf16>
    %c0_31 = arith.constant 0 : index
    %c0_32 = arith.constant 0 : index
    %80 = vector.load %arg8[%c0_31, %c0_32] : memref<128x64xbf16, #tpu.memory_space<vmem>>, vector<128x64xbf16>
    %cst_33 = arith.constant dense<0.000000e+00> : vector<2x64xf32>
    %81 = tpu.matmul %79, %80, %cst_33 {dimension_numbers = #tpu.dot_dimension_numbers<[1], [0], [0], [1], [0, 0, 1, 1], [], []>} : vector<2x128xbf16>, vector<128x64xbf16>, vector<2x64xf32> -> vector<2x64xf32>
    %c3 = arith.constant 3 : index
    %c0_34 = arith.constant 0 : index
    %82 = vector.load %arg9[%c3, %c0_34] : memref<8x192xf32, #tpu.memory_space<vmem>>, vector<1x64xf32>
    %83 = vector.broadcast %82 : vector<1x64xf32> to vector<2x64xf32>
    %84 = arith.addf %81, %83 : vector<2x64xf32>
    %cst_35 = arith.constant 0.000000e+00 : f32
    %85 = vector.broadcast %cst_35 : f32 to vector<2x24xf32>
    %86 = tpu.concatenate %84, %75, %35, %85 in 1 : vector<2x64xf32>, vector<2x32xf32>, vector<2x8xf32>, vector<2x24xf32> -> vector<2x128xf32>
    %c0_36 = arith.constant 0 : index
    %c0_37 = arith.constant 0 : index
    %c0_38 = arith.constant 0 : index
    %87 = vector.load %arg10[%c0_36, %c0_37, %c0_38] : memref<1x2x128xf32, #tpu.memory_space<vmem>>, vector<1x2x128xf32>
    %88 = vector.shape_cast %87 : vector<1x2x128xf32> to vector<2x128xf32>
    %89 = vector.shape_cast %86 : vector<2x128xf32> to vector<1x2x128xf32>
    tpu.vector_store %arg10[%c0_36, %c0_37, %c0_38], %89 {strides = array<i32>} : memref<1x2x128xf32, #tpu.memory_space<vmem>>, vector<1x2x128xf32>,
    return
  }
  func.func @transform_0(%arg0: i32) -> (i32, i32, i32) {
    %c0_i32 = arith.constant 0 : i32
    %c0_i32_0 = arith.constant 0 : i32
    %c0_i32_1 = arith.constant 0 : i32
    return %arg0, %c0_i32, %c0_i32_0 : i32, i32, i32
  }
  func.func @transform_1(%arg0: i32) -> (i32, i32) {
    %c0_i32 = arith.constant 0 : i32
    %c0_i32_0 = arith.constant 0 : i32
    %c0_i32_1 = arith.constant 0 : i32
    return %c0_i32, %c0_i32_0 : i32, i32
  }
  func.func @transform_2(%arg0: i32) -> (i32, i32, i32) {
    %c0_i32 = arith.constant 0 : i32
    %c0_i32_0 = arith.constant 0 : i32
    %c0_i32_1 = arith.constant 0 : i32
    %c0_i32_2 = arith.constant 0 : i32
    return %c0_i32, %c0_i32_0, %c0_i32_1 : i32, i32, i32
  }
  func.func @transform_3(%arg0: i32) -> (i32, i32) {
    %c0_i32 = arith.constant 0 : i32
    %c0_i32_0 = arith.constant 0 : i32
    %c0_i32_1 = arith.constant 0 : i32
    return %c0_i32, %c0_i32_0 : i32, i32
  }
  func.func @transform_4(%arg0: i32) -> (i32, i32) {
    %c0_i32 = arith.constant 0 : i32
    %c0_i32_0 = arith.constant 0 : i32
    %c0_i32_1 = arith.constant 0 : i32
    return %c0_i32, %c0_i32_0 : i32, i32
  }
  func.func @transform_5(%arg0: i32) -> (i32, i32) {
    %c0_i32 = arith.constant 0 : i32
    %c0_i32_0 = arith.constant 0 : i32
    %c0_i32_1 = arith.constant 0 : i32
    return %c0_i32, %c0_i32_0 : i32, i32
  }
  func.func @transform_6(%arg0: i32) -> (i32, i32) {
    %c0_i32 = arith.constant 0 : i32
    %c0_i32_0 = arith.constant 0 : i32
    %c0_i32_1 = arith.constant 0 : i32
    return %c0_i32, %c0_i32_0 : i32, i32
  }
  func.func @transform_7(%arg0: i32) -> (i32, i32) {
    %c0_i32 = arith.constant 0 : i32
    %c0_i32_0 = arith.constant 0 : i32
    %c0_i32_1 = arith.constant 0 : i32
    return %c0_i32, %c0_i32_0 : i32, i32
  }
  func.func @transform_8(%arg0: i32) -> (i32, i32) {
    %c0_i32 = arith.constant 0 : i32
    %c0_i32_0 = arith.constant 0 : i32
    %c0_i32_1 = arith.constant 0 : i32
    return %c0_i32, %c0_i32_0 : i32, i32
  }
  func.func @transform_9(%arg0: i32) -> (i32, i32, i32) {
    %c0_i32 = arith.constant 0 : i32
    %c0_i32_0 = arith.constant 0 : i32
    %c0_i32_1 = arith.constant 0 : i32
    return %arg0, %c0_i32, %c0_i32_0 : i32, i32, i32
  }
}

</mosaic_0001>

<llo_original>
// kernel: decoder_decode.1
$region0: #{decoder_decode.1}
  #allocation0 [shape = 'u32[]', space=smem, size = 0x4, offset = 0x4, fixed_abs, tag = 'smem constant byte address 0x4 - core index']
  #allocation1 [shape = 'u32[144,128]{1,0:T(1,128)}', space=vmem, size = 0x12000, scoped, tag = 'internal scratch']
  #allocation2 [shape = 'f32[2,32]{1,0:T(2,128)}', space=vmem, size = 0x400, scoped, tag = 'scratch operand']
  #allocation3 [shape = 'f32[2,8,32]{2,1,0:T(8,128)}', space=vmem, size = 0x2000, scoped, tag = 'scratch operand']
  %s0 = inlined_call_operand.vmem [shape: bf16[4,2,32], index: 0, kind: input, shape index: {}]
  %s1 = inlined_call_operand.vmem [shape: f32[2,32], index: 1, kind: input, shape index: {}]
  %s2 = inlined_call_operand.vmem [shape: bf16[2,8,64], index: 2, kind: input, shape index: {}]
  %s3 = inlined_call_operand.vmem [shape: f32[2,8], index: 3, kind: input, shape index: {}]
  %s4 = inlined_call_operand.vmem [shape: bf16[32,32], index: 4, kind: input, shape index: {}]
  %s5 = inlined_call_operand.vmem [shape: bf16[64,32], index: 5, kind: input, shape index: {}]
  %s6 = inlined_call_operand.vmem [shape: bf16[128,192], index: 6, kind: input, shape index: {}]
  %s7 = inlined_call_operand.vmem [shape: bf16[128,64], index: 7, kind: input, shape index: {}]
  %s8 = inlined_call_operand.vmem [shape: f32[8,192], index: 8, kind: input, shape index: {}]
  %s9 = inlined_call_operand.vmem [shape: f32[4,2,128], index: 9, kind: output, shape index: {}]
  %s10 = sld [smem:[#allocation0]]
  $region73: #{decoder_decode.1} parent=0
    _
  %s12 = ssub.s32 1, %s10
  %s13 = scalar_select 0, %s12, %s10
  loop: start=0, step=1, limit=6
  $region2: #{decoder_decode.1} parent=0 // loop_pre_header
    _
  $region3: #{decoder_decode.1} parent=0 // loop_header
    %s15 = sphi 0, %s19
    %p16 = scmp.ge.s32.totalorder %s15, 6
    %s25 = sphi 0, %s27
    %s28 = sphi 0, %s25
    %s29 = sphi 0, %s28
    %s45 = sphi 0, %s29
    %s49 = sphi 0, %s49
    %s51 = sphi 0, %s49
    %s52 = sphi 0, %s51
    %s66 = sphi 0, %s52
    %s70 = sphi 0, %s70
    %s72 = sphi 0, %s70
    %s73 = sphi 0, %s72
    %s87 = sphi 0, %s73
    %s91 = sphi 0, %s91
    %s93 = sphi 0, %s91
    %s94 = sphi 0, %s93
    %s108 = sphi 0, %s94
    %s112 = sphi 0, %s112
    %s114 = sphi 0, %s112
    %s115 = sphi 0, %s114
    %s129 = sphi 0, %s115
    %s133 = sphi 0, %s133
    %s135 = sphi 0, %s133
    %s136 = sphi 0, %s135
    %s150 = sphi 0, %s136
    %s154 = sphi 0, %s154
    %s156 = sphi 0, %s154
    %s157 = sphi 0, %s156
    %s171 = sphi 0, %s157
    %s175 = sphi 0, %s175
    %s177 = sphi 0, %s175
    %s178 = sphi 0, %s177
    %s192 = sphi 0, %s178
    %s196 = sphi 0, %s196
    %s198 = sphi 0, %s196
    %s199 = sphi 0, %s198
    %s213 = sphi 0, %s199
    %s219 = sphi 0, %s221
    %s222 = sphi 0, %s219
    %s223 = sphi 0, %s222
    %s239 = sphi 0, %s223
  $region4: #{decoder_decode.1} parent=0 // loop_header_branch
    %18 = sbr.rel (%p16) target = $region8
  $region5: #{decoder_decode.1} parent=0 // loop_body
    %s20 = ssub.s32 %s15, 1
    %s21 = ssub.s32 %s15, 2
    %s22 = sadd.s32 %s15, 1
    %s23 = ssub.s32 %s15, %s22
    %p24 = scmp.eq.s32.totalorder %s23, 0
    %s26 = sadd.s32 %s25, 1
    %s27 = scalar_select %p24, %s25, %s26
    %p30 = pneg %p24
    %p31 = scmp.eq.s32.totalorder %s15, 3
    %p32 = por %p30, %p31
    %p33 = scmp.ne.s32.totalorder %s25, %s28
    %p34 = scmp.eq.s32.totalorder %s15, 0
    %p35 = por %p33, %p34
    %p36 = scmp.ne.s32.totalorder %s25, %s28
    %p37 = scmp.eq.s32.totalorder %s20, 3
    %p38 = por %p36, %p37
    %p39 = scmp.ne.s32.totalorder %s28, %s29
    %p40 = scmp.eq.s32.totalorder %s20, 0
    %p41 = por %p39, %p40
    %p42 = scmp.ne.s32.totalorder %s28, %s29
    %p43 = scmp.eq.s32.totalorder %s21, 3
    %p44 = por %p42, %p43
    %p46 = scmp.ne.s32.totalorder %s29, %s45
    %p47 = scmp.eq.s32.totalorder %s21, 0
    %p48 = por %p46, %p47
    %s50 = sadd.s32 %s49, 1
    %p53 = scmp.eq.s32.totalorder %s15, 3
    %p54 = scmp.ne.s32.totalorder %s49, %s51
    %p55 = scmp.eq.s32.totalorder %s15, 0
    %p56 = por %p54, %p55
    %p57 = scmp.ne.s32.totalorder %s49, %s51
    %p58 = scmp.eq.s32.totalorder %s20, 3
    %p59 = por %p57, %p58
    %p60 = scmp.ne.s32.totalorder %s51, %s52
    %p61 = scmp.eq.s32.totalorder %s20, 0
    %p62 = por %p60, %p61
    %p63 = scmp.ne.s32.totalorder %s51, %s52
    %p64 = scmp.eq.s32.totalorder %s21, 3
    %p65 = por %p63, %p64
    %p67 = scmp.ne.s32.totalorder %s52, %s66
    %p68 = scmp.eq.s32.totalorder %s21, 0
    %p69 = por %p67, %p68
    %s71 = sadd.s32 %s70, 1
    %p74 = scmp.eq.s32.totalorder %s15, 3
    %p75 = scmp.ne.s32.totalorder %s70, %s72
    %p76 = scmp.eq.s32.totalorder %s15, 0
    %p77 = por %p75, %p76
    %p78 = scmp.ne.s32.totalorder %s70, %s72
    %p79 = scmp.eq.s32.totalorder %s20, 3
    %p80 = por %p78, %p79
    %p81 = scmp.ne.s32.totalorder %s72, %s73
    %p82 = scmp.eq.s32.totalorder %s20, 0
    %p83 = por %p81, %p82
    %p84 = scmp.ne.s32.totalorder %s72, %s73
    %p85 = scmp.eq.s32.totalorder %s21, 3
    %p86 = por %p84, %p85
    %p88 = scmp.ne.s32.totalorder %s73, %s87
    %p89 = scmp.eq.s32.totalorder %s21, 0
    %p90 = por %p88, %p89
    %s92 = sadd.s32 %s91, 1
    %p95 = scmp.eq.s32.totalorder %s15, 3
    %p96 = scmp.ne.s32.totalorder %s91, %s93
    %p97 = scmp.eq.s32.totalorder %s15, 0
    %p98 = por %p96, %p97
    %p99 = scmp.ne.s32.totalorder %s91, %s93
    %p100 = scmp.eq.s32.totalorder %s20, 3
    %p101 = por %p99, %p100
    %p102 = scmp.ne.s32.totalorder %s93, %s94
    %p103 = scmp.eq.s32.totalorder %s20, 0
    %p104 = por %p102, %p103
    %p105 = scmp.ne.s32.totalorder %s93, %s94
    %p106 = scmp.eq.s32.totalorder %s21, 3
    %p107 = por %p105, %p106
    %p109 = scmp.ne.s32.totalorder %s94, %s108
    %p110 = scmp.eq.s32.totalorder %s21, 0
    %p111 = por %p109, %p110
    %s113 = sadd.s32 %s112, 1
    %p116 = scmp.eq.s32.totalorder %s15, 3
    %p117 = scmp.ne.s32.totalorder %s112, %s114
    %p118 = scmp.eq.s32.totalorder %s15, 0
    %p119 = por %p117, %p118
    %p120 = scmp.ne.s32.totalorder %s112, %s114
    %p121 = scmp.eq.s32.totalorder %s20, 3
    %p122 = por %p120, %p121
    %p123 = scmp.ne.s32.totalorder %s114, %s115
    %p124 = scmp.eq.s32.totalorder %s20, 0
    %p125 = por %p123, %p124
    %p126 = scmp.ne.s32.totalorder %s114, %s115
    %p127 = scmp.eq.s32.totalorder %s21, 3
    %p128 = por %p126, %p127
    %p130 = scmp.ne.s32.totalorder %s115, %s129
    %p131 = scmp.eq.s32.totalorder %s21, 0
    %p132 = por %p130, %p131
    %s134 = sadd.s32 %s133, 1
    %p137 = scmp.eq.s32.totalorder %s15, 3
    %p138 = scmp.ne.s32.totalorder %s133, %s135
    %p139 = scmp.eq.s32.totalorder %s15, 0
    %p140 = por %p138, %p139
    %p141 = scmp.ne.s32.totalorder %s133, %s135
    %p142 = scmp.eq.s32.totalorder %s20, 3
    %p143 = por %p141, %p142
    %p144 = scmp.ne.s32.totalorder %s135, %s136
    %p145 = scmp.eq.s32.totalorder %s20, 0
    %p146 = por %p144, %p145
    %p147 = scmp.ne.s32.totalorder %s135, %s136
    %p148 = scmp.eq.s32.totalorder %s21, 3
    %p149 = por %p147, %p148
    %p151 = scmp.ne.s32.totalorder %s136, %s150
    %p152 = scmp.eq.s32.totalorder %s21, 0
    %p153 = por %p151, %p152
    %s155 = sadd.s32 %s154, 1
    %p158 = scmp.eq.s32.totalorder %s15, 3
    %p159 = scmp.ne.s32.totalorder %s154, %s156
    %p160 = scmp.eq.s32.totalorder %s15, 0
    %p161 = por %p159, %p160
    %p162 = scmp.ne.s32.totalorder %s154, %s156
    %p163 = scmp.eq.s32.totalorder %s20, 3
    %p164 = por %p162, %p163
    %p165 = scmp.ne.s32.totalorder %s156, %s157
    %p166 = scmp.eq.s32.totalorder %s20, 0
    %p167 = por %p165, %p166
    %p168 = scmp.ne.s32.totalorder %s156, %s157
    %p169 = scmp.eq.s32.totalorder %s21, 3
    %p170 = por %p168, %p169
    %p172 = scmp.ne.s32.totalorder %s157, %s171
    %p173 = scmp.eq.s32.totalorder %s21, 0
    %p174 = por %p172, %p173
    %s176 = sadd.s32 %s175, 1
    %p179 = scmp.eq.s32.totalorder %s15, 3
    %p180 = scmp.ne.s32.totalorder %s175, %s177
    %p181 = scmp.eq.s32.totalorder %s15, 0
    %p182 = por %p180, %p181
    %p183 = scmp.ne.s32.totalorder %s175, %s177
    %p184 = scmp.eq.s32.totalorder %s20, 3
    %p185 = por %p183, %p184
    %p186 = scmp.ne.s32.totalorder %s177, %s178
    %p187 = scmp.eq.s32.totalorder %s20, 0
    %p188 = por %p186, %p187
    %p189 = scmp.ne.s32.totalorder %s177, %s178
    %p190 = scmp.eq.s32.totalorder %s21, 3
    %p191 = por %p189, %p190
    %p193 = scmp.ne.s32.totalorder %s178, %s192
    %p194 = scmp.eq.s32.totalorder %s21, 0
    %p195 = por %p193, %p194
    %s197 = sadd.s32 %s196, 1
    %p200 = scmp.eq.s32.totalorder %s15, 3
    %p201 = scmp.ne.s32.totalorder %s196, %s198
    %p202 = scmp.eq.s32.totalorder %s15, 0
    %p203 = por %p201, %p202
    %p204 = scmp.ne.s32.totalorder %s196, %s198
    %p205 = scmp.eq.s32.totalorder %s20, 3
    %p206 = por %p204, %p205
    %p207 = scmp.ne.s32.totalorder %s198, %s199
    %p208 = scmp.eq.s32.totalorder %s20, 0
    %p209 = por %p207, %p208
    %p210 = scmp.ne.s32.totalorder %s198, %s199
    %p211 = scmp.eq.s32.totalorder %s21, 3
    %p212 = por %p210, %p211
    %p214 = scmp.ne.s32.totalorder %s199, %s213
    %p215 = scmp.eq.s32.totalorder %s21, 0
    %p216 = por %p214, %p215
    %s217 = ssub.s32 %s15, %s22
    %p218 = scmp.eq.s32.totalorder %s217, 0
    %s220 = sadd.s32 %s219, 1
    %s221 = scalar_select %p218, %s219, %s220
    %p224 = pneg %p218
    %p225 = scmp.eq.s32.totalorder %s15, 3
    %p226 = por %p224, %p225
    %p227 = scmp.ne.s32.totalorder %s219, %s222
    %p228 = scmp.eq.s32.totalorder %s15, 0
    %p229 = por %p227, %p228
    %p230 = scmp.ne.s32.totalorder %s219, %s222
    %p231 = scmp.eq.s32.totalorder %s20, 3
    %p232 = por %p230, %p231
    %p233 = scmp.ne.s32.totalorder %s222, %s223
    %p234 = scmp.eq.s32.totalorder %s20, 0
    %p235 = por %p233, %p234
    %p236 = scmp.ne.s32.totalorder %s222, %s223
    %p237 = scmp.eq.s32.totalorder %s21, 3
    %p238 = por %p236, %p237
    %p240 = scmp.ne.s32.totalorder %s223, %s239
    %p241 = scmp.eq.s32.totalorder %s21, 0
    %p242 = por %p240, %p241
    %p243 = scmp.le.s32.totalorder 1, %s15
    %p244 = scmp.lt.s32.totalorder %s15, 5
    %p245 = pnand %p243, %p244
    %p246 = pneg %p245
    // Predicated region
    $region9: #{decoder_decode.1} parent=5 // pred_check
      _
    $region10: #{decoder_decode.1} parent=5 // pred_check_branch
      %248 = sbr.rel (%p245) target = $region12
    $region11: #{decoder_decode.1} parent=5 // pred_region
      %s249 = ssub.s32 %s15, 1
      // Predicated region
      $region13: #{decoder_decode.1} parent=11 // pred_check
        %p250 = pneg %p62
      $region14: #{decoder_decode.1} parent=11 // pred_check_branch
        %252 = sbr.rel (%p250) target = $region16
      $region15: #{decoder_decode.1} parent=11 // pred_region
        _
      $region16: #{decoder_decode.1} parent=11 // pred_fallthru
        _
      // Predicated region
      $region17: #{decoder_decode.1} parent=11 // pred_check
        %p253 = pneg %p83
      $region18: #{decoder_decode.1} parent=11 // pred_check_branch
        %255 = sbr.rel (%p253) target = $region20
      $region19: #{decoder_decode.1} parent=11 // pred_region
        _
      $region20: #{decoder_decode.1} parent=11 // pred_fallthru
        _
      // Predicated region
      $region21: #{decoder_decode.1} parent=11 // pred_check
        %p256 = pneg %p104
      $region22: #{decoder_decode.1} parent=11 // pred_check_branch
        %258 = sbr.rel (%p256) target = $region24
      $region23: #{decoder_decode.1} parent=11 // pred_region
        _
      $region24: #{decoder_decode.1} parent=11 // pred_fallthru
        _
      // Predicated region
      $region25: #{decoder_decode.1} parent=11 // pred_check
        %p259 = pneg %p125
      $region26: #{decoder_decode.1} parent=11 // pred_check_branch
        %261 = sbr.rel (%p259) target = $region28
      $region27: #{decoder_decode.1} parent=11 // pred_region
        _
      $region28: #{decoder_decode.1} parent=11 // pred_fallthru
        _
      // Predicated region
      $region29: #{decoder_decode.1} parent=11 // pred_check
        %p262 = pneg %p146
      $region30: #{decoder_decode.1} parent=11 // pred_check_branch
        %264 = sbr.rel (%p262) target = $region32
      $region31: #{decoder_decode.1} parent=11 // pred_region
        _
      $region32: #{decoder_decode.1} parent=11 // pred_fallthru
        _
      // Predicated region
      $region33: #{decoder_decode.1} parent=11 // pred_check
        %p265 = pneg %p167
      $region34: #{decoder_decode.1} parent=11 // pred_check_branch
        %267 = sbr.rel (%p265) target = $region36
      $region35: #{decoder_decode.1} parent=11 // pred_region
        _
      $region36: #{decoder_decode.1} parent=11 // pred_fallthru
        _
      // Predicated region
      $region37: #{decoder_decode.1} parent=11 // pred_check
        %p268 = pneg %p188
      $region38: #{decoder_decode.1} parent=11 // pred_check_branch
        %270 = sbr.rel (%p268) target = $region40
      $region39: #{decoder_decode.1} parent=11 // pred_region
        _
      $region40: #{decoder_decode.1} parent=11 // pred_fallthru
        _
      // Predicated region
      $region41: #{decoder_decode.1} parent=11 // pred_check
        %p271 = pneg %p209
      $region42: #{decoder_decode.1} parent=11 // pred_check_branch
        %273 = sbr.rel (%p271) target = $region44
      $region43: #{decoder_decode.1} parent=11 // pred_region
        _
      $region44: #{decoder_decode.1} parent=11 // pred_fallthru
        _
    $region12: #{decoder_decode.1} parent=5 // pred_fallthru
      _
    %p274 = scmp.lt.s32.totalorder %s15, 4
    // Predicated region
    $region45: #{decoder_decode.1} parent=5 // pred_check
      %p275 = pneg %p274
    $region46: #{decoder_decode.1} parent=5 // pred_check_branch
      %277 = sbr.rel (%p275) target = $region48
    $region47: #{decoder_decode.1} parent=5 // pred_region
      // Predicated region
      $region49: #{decoder_decode.1} parent=47 // pred_check
        %p278 = pneg %p35
      $region50: #{decoder_decode.1} parent=47 // pred_check_branch
        %280 = sbr.rel (%p278) target = $region52
      $region51: #{decoder_decode.1} parent=47 // pred_region
        %p281 = scmp.lt.s32.totalorder %s15, 3
        %s282 = scalar_select %p281, %s15, 3
        %s283 = scalar_lea.vmem %s0, %s282
      $region52: #{decoder_decode.1} parent=47 // pred_fallthru
        _
    $region48: #{decoder_decode.1} parent=5 // pred_fallthru
      _
    %p284 = scmp.le.s32.totalorder 1, %s15
    %p285 = scmp.lt.s32.totalorder %s15, 5
    %p286 = pnand %p284, %p285
    %p287 = pneg %p286
    // Predicated region
    $region53: #{decoder_decode.1} parent=5 // pred_check
      _
    $region54: #{decoder_decode.1} parent=5 // pred_check_branch
      %289 = sbr.rel (%p286) target = $region56
    $region55: #{decoder_decode.1} parent=5 // pred_region
      %s290 = ssub.s32 %s15, 1
      %p291 = scmp.lt.s32.totalorder %s20, 3
      %s292 = scalar_select %p291, %s20, 3
      %s293 = scalar_lea.vmem %s0, %s292
      %p294 = pneg %p41
      %p295 = pneg %p38
      %p296 = pneg %p62
      %p297 = pneg %p59
      %p298 = pneg %p83
      %p299 = pneg %p80
      %p300 = pneg %p104
      %p301 = pneg %p101
      %p302 = pneg %p125
      %p303 = pneg %p122
      %p304 = pneg %p146
      %p305 = pneg %p143
      %p306 = pneg %p167
      %p307 = pneg %p164
      %p308 = pneg %p188
      %p309 = pneg %p185
      %p310 = pneg %p209
      %p311 = pneg %p206
      %p312 = pneg %p235
      %p313 = pneg %p232
      %p314 = scmp.lt.s32.totalorder %s20, 3
      %s315 = scalar_select %p314, %s20, 3
      %s316 = smul.addr %s315, 2
      %s317 = scalar_lea.vmem %s9, %s316
      %p318 = scmp.lt.s32.totalorder %s20, 3
      %s319 = scalar_select %p318, %s20, 3
      %s320 = scalar_lea.vmem %s0, %s319
      %p321 = scmp.lt.s32.totalorder %s20, 3
      %s322 = scalar_select %p321, %s20, 3
      %s323 = smul.addr %s322, 2
      %s324 = scalar_lea.vmem %s9, %s323
      %p326 = scmp.eq.s32.totalorder %s20, 0
      // Predicated region
      $region57: #{decoder_decode.1} parent=55 // pred_check
        %p327 = pneg %p326
      $region58: #{decoder_decode.1} parent=55 // pred_check_branch
        %329 = sbr.rel (%p327) target = $region60
      $region59: #{decoder_decode.1} parent=55 // pred_region
        %v330 = vld [vmem:[%s1] sm:$0x3]
        %vm331 = vcmask 254976
        %332 = vst.msk [vmem:[#allocation2] sm:$0x3] %vm331, %v330
        %v333 = vld [vmem:[%s2] sm:$0xf]
        %v334 = vld [vmem:[%s2 + $0x4] sm:$0xf]
        %v335 = vld [vmem:[%s5] sm:$0xf]
        %v336 = vld [vmem:[%s5 + $0x4] sm:$0xf]
        %v337 = vld [vmem:[%s5 + $0x8] sm:$0xf]
        %v338 = vld [vmem:[%s5 + $0xc] sm:$0xf]
        %v339 = vld [vmem:[%s5 + $0x10] sm:$0xf]
        %v340 = vld [vmem:[%s5 + $0x14] sm:$0xf]
        %v341 = vld [vmem:[%s5 + $0x18] sm:$0xf]
        %v342 = vld [vmem:[%s5 + $0x1c] sm:$0xf]
        %v345 = vunpack.c.l.b16 %v333
        %v346 = vunpack.c.l.b16 %v334
        %v347 = vpack.c.b16 %v346, %v345
        %v356 = vunpack.c.l.b16 %v335
        %v357 = vunpack.c.l.b16 %v336
        %v358 = vunpack.c.l.b16 %v337
        %v359 = vunpack.c.l.b16 %v338
        %v360 = vunpack.c.l.b16 %v339
        %v361 = vunpack.c.l.b16 %v340
        %v362 = vunpack.c.l.b16 %v341
        %v363 = vunpack.c.l.b16 %v342
        %v364 = vpack.c.b16 %v357, %v356
        %v365 = vpack.c.b16 %v359, %v358
        %v366 = vpack.c.b16 %v361, %v360
        %v367 = vpack.c.b16 %v363, %v362
        %vm372 = vcmask 523264
        %v374 = vsel %vm372, %v347, 0
        %376 = vmatprep.subr.bf16.mxu0 0
        %377 = vmatpush1.bf16.msra.mxu0 %v364
        %378 = vmatprep.subr.bf16.mxu0 0
        %379 = vmatpush1.bf16.msra.mxu0 %v365
        %380 = vmatprep.subr.bf16.mxu0 0
        %381 = vmatpush1.bf16.msra.mxu0 %v366
        %382 = vmatprep.subr.bf16.mxu0 0
        %383 = vmatpush1.bf16.msra.mxu0 %v367
        %384 = vmatprep.subr.bf16.mxu0 0
        %385 = vmatpush1.bf16.msra.mxu0 0
        %386 = vmatprep.subr.bf16.mxu0 0
        %387 = vmatpush1.bf16.msra.mxu0 0
        %388 = vmatprep.subr.bf16.mxu0 0
        %389 = vmatpush1.bf16.msra.mxu0 0
        %390 = vmatprep.subr.bf16.mxu0 0
        %391 = vmatpush1.bf16.msra.mxu0 0
        %392 = vmatprep.subr.bf16.mxu0 0
        %393 = vmatpush1.bf16.msra.mxu0 0
        %394 = vmatprep.subr.bf16.mxu0 0
        %395 = vmatpush1.bf16.msra.mxu0 0
        %396 = vmatprep.subr.bf16.mxu0 0
        %397 = vmatpush1.bf16.msra.mxu0 0
        %398 = vmatprep.subr.bf16.mxu0 0
        %399 = vmatpush1.bf16.msra.mxu0 0
        %400 = vmatprep.subr.bf16.mxu0 0
        %401 = vmatpush1.bf16.msra.mxu0 0
        %402 = vmatprep.subr.bf16.mxu0 0
        %403 = vmatpush1.bf16.msra.mxu0 0
        %404 = vmatprep.subr.bf16.mxu0 0
        %405 = vmatpush1.bf16.msra.mxu0 0
        %406 = vmatprep.subr.bf16.mxu0 0
        %407 = vmatpush1.bf16.msra.mxu0 0
        %408 = vmatprep.mubr.bf16.mxu0 0
        %409 = vmatmul.mubr.bf16.gmra.mrb[0].mxu0 %v374
        %v410 = vpop.f32.mrb[0].mxu0
        %v411 = vadd.f32 0.0, %v410
        %v412 = vpop.f32.mrb[0].mxu0
        %v413 = vpop.f32.mrb[0].mxu0
        %v414 = vadd.f32 0.0, %v413
        %v415 = vpop.f32.mrb[0].mxu0
        %416 = vdwg.mxu0
        %v417 = vld [vmem:[%s8] ss:$0 sm:$0xff]
        %v418 = vadd.f32 %v411, %v417
        %v419 = vadd.f32 %v414, %v417
        %vm420 = vcmask 261120
        %421 = vst.msk [vmem:[#allocation3] sm:$0xff] %vm420, %v418
        %422 = vst.msk [vmem:[#allocation3 + $0x8] sm:$0xff] %vm420, %v419
      $region60: #{decoder_decode.1} parent=55 // pred_fallthru
        _
      %v423 = vld [vmem:[#allocation2] sm:$0x3]
      %v424 = vld [vmem:[%s320] sm:$0x1]
      %v425 = vld [vmem:[%s2] sm:$0xf]
      %v426 = vld [vmem:[%s2 + $0x4] sm:$0xf]
      %v427 = vunpack.c.l.bf16 %v425
      %v428 = vunpack.c.l.bf16 %v426
      %v429 = vpack.c.bf16 %v423, %v423
      %v430 = vld [vmem:[%s4] sm:$0xf]
      %v431 = vld [vmem:[%s4 + $0x4] sm:$0xf]
      %v432 = vld [vmem:[%s4 + $0x8] sm:$0xf]
      %v433 = vld [vmem:[%s4 + $0xc] sm:$0xf]
      %v438 = vunpack.c.l.b16 %v430
      %v439 = vunpack.c.l.b16 %v431
      %v440 = vunpack.c.l.b16 %v432
      %v441 = vunpack.c.l.b16 %v433
      %v442 = vpack.c.b16 %v439, %v438
      %v443 = vpack.c.b16 %v441, %v440
      %vm446 = vcmask 261120
      %v448 = vsel %vm446, %v429, 0
      %450 = vmatprep.subr.bf16.mxu0 0
      %451 = vmatpush1.bf16.msra.mxu0 %v442
      %452 = vmatprep.subr.bf16.mxu0 0
      %453 = vmatpush1.bf16.msra.mxu0 %v443
      %454 = vmatprep.subr.bf16.mxu0 0
      %455 = vmatpush1.bf16.msra.mxu0 0
      %456 = vmatprep.subr.bf16.mxu0 0
      %457 = vmatpush1.bf16.msra.mxu0 0
      %458 = vmatprep.subr.bf16.mxu0 0
      %459 = vmatpush1.bf16.msra.mxu0 0
      %460 = vmatprep.subr.bf16.mxu0 0
      %461 = vmatpush1.bf16.msra.mxu0 0
      %462 = vmatprep.subr.bf16.mxu0 0
      %463 = vmatpush1.bf16.msra.mxu0 0
      %464 = vmatprep.subr.bf16.mxu0 0
      %465 = vmatpush1.bf16.msra.mxu0 0
      %466 = vmatprep.subr.bf16.mxu0 0
      %467 = vmatpush1.bf16.msra.mxu0 0
      %468 = vmatprep.subr.bf16.mxu0 0
      %469 = vmatpush1.bf16.msra.mxu0 0
      %470 = vmatprep.subr.bf16.mxu0 0
      %471 = vmatpush1.bf16.msra.mxu0 0
      %472 = vmatprep.subr.bf16.mxu0 0
      %473 = vmatpush1.bf16.msra.mxu0 0
      %474 = vmatprep.subr.bf16.mxu0 0
      %475 = vmatpush1.bf16.msra.mxu0 0
      %476 = vmatprep.subr.bf16.mxu0 0
      %477 = vmatpush1.bf16.msra.mxu0 0
      %478 = vmatprep.subr.bf16.mxu0 0
      %479 = vmatpush1.bf16.msra.mxu0 0
      %480 = vmatprep.subr.bf16.mxu0 0
      %481 = vmatpush1.bf16.msra.mxu0 0
      %482 = vmatprep.mubr.bf16.mxu0 0
      %483 = vmatmul.mubr.bf16.gmra.mrb[0].mxu0 %v448
      %v484 = vpop.f32.mrb[0].mxu0
      %v485 = vadd.f32 0.0, %v484
      %v486 = vpop.f32.mrb[0].mxu0
      %v487 = vpop.f32.mrb[0].mxu0
      %v488 = vpop.f32.mrb[0].mxu0
      %489 = vdwg.mxu0
      %v490 = vld [vmem:[#allocation3] sm:$0xff]
      %v491 = vld [vmem:[#allocation3 + $0x8] sm:$0xff]
      %v494 = vunpack.c.l.s4 1966171168
      %v495 = vunpack.c.0.s8 %v494
      %v496 = vlaneseq
      %v497 = vshrl.u32 %v496, 7
      %v498 = vsub.s32 %v495, %v497
      %v499 = vrot.slane %v485, %v498
      %v500 = vcombine.high %v499, %v499
      %v502 = vunpack.c.l.s4 1966171168
      %v503 = vunpack.c.0.s8 %v502
      %v504 = vlaneseq
      %v505 = vshrl.u32 %v504, 7
      %v506 = vsub.s32 %v503, %v505
      %v507 = vrot.slane %v499, %v506
      %v509 = vunpack.c.l.s4 1966171168
      %v510 = vunpack.c.0.s8 %v509
      %v511 = vlaneseq
      %v512 = vshrl.u32 %v511, 7
      %v513 = vsub.s32 %v510, %v512
      %v514 = vrot.slane %v500, %v513
      %v515 = vlaneseq
      %v516 = vshrl.u32 %v515, 7
      %v517 = vsub.s32 0, %v516
      %v518 = vrot.slane %v507, %v517
      %v519 = vlaneseq
      %v520 = vshrl.u32 %v519, 7
      %v521 = vsub.s32 0, %v520
      %v522 = vrot.slane %v514, %v521
      %v525 = vadd.f32 %v490, %v518
      %v526 = vadd.f32 %v491, %v522
      %v527 = vtanh.pop %v525
      %v528 = vtanh.pop %v526
      %v529 = vld [vmem:[%s8 + $0x1] ss:$0 sm:$0xff]
      %v530 = vmul.f32 %v527, %v529
      %v531 = vmul.f32 %v528, %v529
      %v532 = vsel %vm446, %v530, 0.0
      %533 = vadd.xlane.f32.xlu0 %v532
      %v534 = vpop.xlane.xlu0 %533
      %v535 = vsel %vm446, %v531, 0.0
      %536 = vadd.xlane.f32.xlu0 %v535
      %v537 = vpop.xlane.xlu0 %536
      %v538 = vld [vmem:[%s3] sm:$0x3]
      %vm539 = vcmp.eq.f32.partialorder %v538, 0.0
      %v542 = vlaneseq
      %v543 = vand.u32 %v542, 127
      %v544 = vlaneseq
      %v545 = vshrl.u32 %v544, 7
      %v546 = vsub.s32 %v543, %v545
      %v547 = vrot.slane %v534, %v546
      %v548 = vlaneseq
      %v549 = vshrl.u32 %v548, 7
      %v550 = vsub.s32 %v543, %v549
      %v551 = vrot.slane %v537, %v550
      %vm552 = vcmask 1041409
      %v553 = vsel %vm552, %v551, %v547
      %v555 = vsel %vm539, -1e+10, %v553
      %vm556 = vcmask 58368
      %v557 = vsel %vm556, %v555, -inf
      %558 = vmax.xlane.f32.xlu0 %v557
      %v559 = vpop.xlane.xlu0 %558
      %v560 = vsub.f32 %v555, %v559
      %v561 = vmul.f32 %v560, 1.442695
      %v562 = vpow.pop %v561
      %v563 = vsel %vm556, %v562, 0.0
      %564 = vadd.xlane.f32.xlu0 %v563
      %v565 = vpop.xlane.xlu0 %564
      %v566 = vrcp.pop %v565
      %v567 = vmul.f32 %v562, %v566
      %v568 = vlaneseq
      %v569 = vshrl.u32 %v568, 7
      %v570 = vsub.s32 0, %v569
      %v571 = vrot.slane %v567, %v570
      %573 = vbcast.lane.b32.xlu0 %v571, 256
      %v574 = vpop.permute.xlu0 %573
      %v575 = vlaneseq
      %v576 = vshrl.u32 %v575, 7
      %v577 = vsub.s32 1, %v576
      %v578 = vrot.slane %v567, %v577
      %580 = vbcast.lane.b32.xlu0 %v578, 256
      %v581 = vpop.permute.xlu0 %580
      %v582 = vmul.f32 %v574, %v427
      %v583 = vmul.f32 %v581, %v428
      %vm584 = vcmask 523264
      %v585 = vsel %vm584, %v582, 0.0
      %v586 = vrot.slane %v585, 4
      %v587 = vadd.f32 %v585, %v586
      %v588 = vrot.slane %v587, 2
      %v589 = vadd.f32 %v587, %v588
      %v590 = vrot.slane %v589, 1
      %v591 = vadd.f32 %v589, %v590
      %v592 = vsel %vm584, %v583, 0.0
      %v593 = vrot.slane %v592, 4
      %v594 = vadd.f32 %v592, %v593
      %v595 = vrot.slane %v594, 2
      %v596 = vadd.f32 %v594, %v595
      %v597 = vrot.slane %v596, 1
      %v598 = vadd.f32 %v596, %v597
      %v599 = vpack.c.bf16 %v591, %v591
      %v600 = vpack.c.bf16 %v598, %v598
      %v603 = vunpack.c.l.b16 %v599
      %v604 = vunpack.c.l.b16 %v600
      %v605 = vsel %vm552, %v604, %v603
      %v606 = vpack.c.b16 %v605, %v605
      %607 = vrot.lane.b32.xlu0 %v606, 32
      %v608 = vpop.permute.xlu0 %607
      %610 = vrot.lane.b32.xlu0 %v429, 96
      %v611 = vpop.permute.xlu0 %610
      %v614 = vsel %vm446, %v424, %v608
      %vm615 = vcmask 785408
      %v617 = vsel %vm615, %v614, %v611
      %v619 = vld [vmem:[%s6] sm:$0xff]
      %v620 = vld [vmem:[%s6 + $0x8] sm:$0xff]
      %v621 = vld [vmem:[%s6 + $0x10] sm:$0xff]
      %v622 = vld [vmem:[%s6 + $0x18] sm:$0xff]
      %v623 = vld [vmem:[%s6 + $0x20] sm:$0xff]
      %v624 = vld [vmem:[%s6 + $0x28] sm:$0xff]
      %v625 = vld [vmem:[%s6 + $0x30] sm:$0xff]
      %v626 = vld [vmem:[%s6 + $0x38] sm:$0xff]
      %v627 = vld [vmem:[%s6 + $0x40] sm:$0xff]
      %v628 = vld [vmem:[%s6 + $0x48] sm:$0xff]
      %v629 = vld [vmem:[%s6 + $0x50] sm:$0xff]
      %v630 = vld [vmem:[%s6 + $0x58] sm:$0xff]
      %v631 = vld [vmem:[%s6 + $0x60] sm:$0xff]
      %v632 = vld [vmem:[%s6 + $0x68] sm:$0xff]
      %v633 = vld [vmem:[%s6 + $0x70] sm:$0xff]
      %v634 = vld [vmem:[%s6 + $0x78] sm:$0xff]
      %s635 = scalar_lea.vmem %s8, 2
      %v636 = vld [vmem:[%s635] ss:$8 sm:$0x3]
      %v638 = vlaneseq
      %v639 = vshrl.u32 %v638, 7
      %v640 = vsub.s32 0, %v639
      %v641 = vrot.slane %v636, %v640
      %v642 = vlaneseq
      %v643 = vshrl.u32 %v642, 7
      %v644 = vsub.s32 1, %v643
      %v645 = vrot.slane %v636, %v644
      %v664 = vunpack.c.l.b16 %v619
      %v665 = vunpack.c.h.b16 %v619
      %v666 = vunpack.c.l.b16 %v620
      %v667 = vunpack.c.h.b16 %v620
      %v668 = vunpack.c.l.b16 %v621
      %v669 = vunpack.c.h.b16 %v621
      %v670 = vunpack.c.l.b16 %v622
      %v671 = vunpack.c.h.b16 %v622
      %v672 = vunpack.c.l.b16 %v623
      %v673 = vunpack.c.h.b16 %v623
      %v674 = vunpack.c.l.b16 %v624
      %v675 = vunpack.c.h.b16 %v624
      %v676 = vunpack.c.l.b16 %v625
      %v677 = vunpack.c.h.b16 %v625
      %v678 = vunpack.c.l.b16 %v626
      %v679 = vunpack.c.h.b16 %v626
      %v680 = vunpack.c.l.b16 %v627
      %v681 = vunpack.c.h.b16 %v627
      %v682 = vunpack.c.l.b16 %v628
      %v683 = vunpack.c.h.b16 %v628
      %v684 = vunpack.c.l.b16 %v629
      %v685 = vunpack.c.h.b16 %v629
      %v686 = vunpack.c.l.b16 %v630
      %v687 = vunpack.c.h.b16 %v630
      %v688 = vunpack.c.l.b16 %v631
      %v689 = vunpack.c.h.b16 %v631
      %v690 = vunpack.c.l.b16 %v632
      %v691 = vunpack.c.h.b16 %v632
      %v692 = vunpack.c.l.b16 %v633
      %v693 = vunpack.c.h.b16 %v633
      %v694 = vunpack.c.l.b16 %v634
      %v695 = vunpack.c.h.b16 %v634
      %v696 = vpack.c.b16 %v666, %v664
      %v697 = vpack.c.b16 %v667, %v665
      %v698 = vpack.c.b16 %v670, %v668
      %v699 = vpack.c.b16 %v671, %v669
      %v700 = vpack.c.b16 %v674, %v672
      %v701 = vpack.c.b16 %v675, %v673
      %v702 = vpack.c.b16 %v678, %v676
      %v703 = vpack.c.b16 %v679, %v677
      %v704 = vpack.c.b16 %v682, %v680
      %v705 = vpack.c.b16 %v683, %v681
      %v706 = vpack.c.b16 %v686, %v684
      %v707 = vpack.c.b16 %v687, %v685
      %v708 = vpack.c.b16 %v690, %v688
      %v709 = vpack.c.b16 %v691, %v689
      %v710 = vpack.c.b16 %v694, %v692
      %v711 = vpack.c.b16 %v695, %v693
      %728 = vmatprep.subr.bf16.mxu0 %v697
      %729 = vmatpush1.bf16.msra.mxu0 %v696
      %730 = vmatprep.subr.bf16.mxu0 %v699
      %731 = vmatpush1.bf16.msra.mxu0 %v698
      %732 = vmatprep.subr.bf16.mxu0 %v701
      %733 = vmatpush1.bf16.msra.mxu0 %v700
      %734 = vmatprep.subr.bf16.mxu0 %v703
      %735 = vmatpush1.bf16.msra.mxu0 %v702
      %736 = vmatprep.subr.bf16.mxu0 %v705
      %737 = vmatpush1.bf16.msra.mxu0 %v704
      %738 = vmatprep.subr.bf16.mxu0 %v707
      %739 = vmatpush1.bf16.msra.mxu0 %v706
      %740 = vmatprep.subr.bf16.mxu0 %v709
      %741 = vmatpush1.bf16.msra.mxu0 %v708
      %742 = vmatprep.subr.bf16.mxu0 %v711
      %743 = vmatpush1.bf16.msra.mxu0 %v710
      %744 = vmatprep.subr.bf16.mxu0 0
      %745 = vmatpush1.bf16.msra.mxu0 0
      %746 = vmatprep.subr.bf16.mxu0 0
      %747 = vmatpush1.bf16.msra.mxu0 0
      %748 = vmatprep.subr.bf16.mxu0 0
      %749 = vmatpush1.bf16.msra.mxu0 0
      %750 = vmatprep.subr.bf16.mxu0 0
      %751 = vmatpush1.bf16.msra.mxu0 0
      %752 = vmatprep.subr.bf16.mxu0 0
      %753 = vmatpush1.bf16.msra.mxu0 0
      %754 = vmatprep.subr.bf16.mxu0 0
      %755 = vmatpush1.bf16.msra.mxu0 0
      %756 = vmatprep.subr.bf16.mxu0 0
      %757 = vmatpush1.bf16.msra.mxu0 0
      %758 = vmatprep.subr.bf16.mxu0 0
      %759 = vmatpush1.bf16.msra.mxu0 0
      %760 = vmatprep.mubr.bf16.mxu0 0
      %761 = vmatmul.mubr.bf16.gmra.mrb[0].mxu0 %v617
      %v762 = vpop.f32.mrb[0].mxu0
      %v763 = vadd.f32 %v641, %v762
      %v764 = vpop.f32.mrb[0].mxu0
      %v765 = vadd.f32 %v645, %v764
      %v766 = vpop.f32.mrb[0].mxu0
      %v767 = vpop.f32.mrb[0].mxu0
      %768 = vdwg.mxu0
      %770 = vrot.lane.b32.xlu0 %v763, 32
      %v771 = vpop.permute.xlu0 %770
      %v773 = vadd.f32 %v763, %v771
      %v774 = vxor.u32 %v773, 2147483648
      %v775 = vmul.f32 %v774, 1.442695
      %v776 = vpow.pop %v775
      %v777 = vadd.f32 %v776, 1.0
      %v778 = vrcp.pop %v777
      %v779 = vmul.f32 1.0, %v778
      %781 = vrot.lane.b32.xlu0 %v765, 32
      %v782 = vpop.permute.xlu0 %781
      %v784 = vadd.f32 %v763, %v782
      %v785 = vxor.u32 %v784, 2147483648
      %v786 = vmul.f32 %v785, 1.442695
      %v787 = vpow.pop %v786
      %v788 = vadd.f32 %v787, 1.0
      %v789 = vrcp.pop %v788
      %v790 = vmul.f32 1.0, %v789
      %791 = vrot.lane.b32.xlu0 %v765, 96
      %v792 = vpop.permute.xlu0 %791
      %v794 = vmul.f32 %v779, %v792
      %796 = vrot.lane.b32.xlu0 %v794, 64
      %v797 = vpop.permute.xlu0 %796
      %v799 = vadd.f32 %v763, %v797
      %v800 = vtanh.pop %v799
      %v801 = vsub.f32 1.0, %v790
      %803 = vrot.lane.b32.xlu0 %v800, 96
      %v804 = vpop.permute.xlu0 %803
      %v806 = vmul.f32 %v801, %v804
      %808 = vrot.lane.b32.xlu0 %v423, 32
      %v809 = vpop.permute.xlu0 %808
      %v811 = vmul.f32 %v790, %v809
      %v812 = vadd.f32 %v806, %v811
      %814 = vrot.lane.b32.xlu0 %v812, 96
      %v815 = vpop.permute.xlu0 %814
      %vm817 = vcmask 254976
      %818 = vst.msk [vmem:[#allocation2] sm:$0x3] %vm817, %v815
      %v819 = vpack.c.bf16 %v812, %v812
      %821 = vrot.lane.b32.xlu0 %v819, 96
      %v822 = vpop.permute.xlu0 %821
      %v825 = vunpack.c.l.s4 1966171168
      %v826 = vunpack.c.0.s8 %v825
      %v827 = vlaneseq
      %v828 = vshrl.u32 %v827, 7
      %v829 = vsub.s32 %v826, %v828
      %v830 = vrot.slane %v424, %v829
      %v832 = vunpack.c.l.s4 1966171168
      %v833 = vunpack.c.0.s8 %v832
      %v834 = vlaneseq
      %v835 = vshrl.u32 %v834, 7
      %v836 = vsub.s32 %v833, %v835
      %v837 = vrot.slane %v830, %v836
      %838 = vrot.lane.b32.xlu0 %v837, 96
      %v839 = vpop.permute.xlu0 %838
      %v841 = vsel %vm446, %v822, %v608
      %v843 = vsel %vm615, %v841, %v839
      %v845 = vld [vmem:[%s7] sm:$0xf]
      %v846 = vld [vmem:[%s7 + $0x4] sm:$0xf]
      %v847 = vld [vmem:[%s7 + $0x8] sm:$0xf]
      %v848 = vld [vmem:[%s7 + $0xc] sm:$0xf]
      %v849 = vld [vmem:[%s7 + $0x10] sm:$0xf]
      %v850 = vld [vmem:[%s7 + $0x14] sm:$0xf]
      %v851 = vld [vmem:[%s7 + $0x18] sm:$0xf]
      %v852 = vld [vmem:[%s7 + $0x1c] sm:$0xf]
      %v853 = vld [vmem:[%s7 + $0x20] sm:$0xf]
      %v854 = vld [vmem:[%s7 + $0x24] sm:$0xf]
      %v855 = vld [vmem:[%s7 + $0x28] sm:$0xf]
      %v856 = vld [vmem:[%s7 + $0x2c] sm:$0xf]
      %v857 = vld [vmem:[%s7 + $0x30] sm:$0xf]
      %v858 = vld [vmem:[%s7 + $0x34] sm:$0xf]
      %v859 = vld [vmem:[%s7 + $0x38] sm:$0xf]
      %v860 = vld [vmem:[%s7 + $0x3c] sm:$0xf]
      %v861 = vld [vmem:[%s8 + $0x3] ss:$0 sm:$0xff]
      %v878 = vunpack.c.l.b16 %v845
      %v879 = vunpack.c.l.b16 %v846
      %v880 = vunpack.c.l.b16 %v847
      %v881 = vunpack.c.l.b16 %v848
      %v882 = vunpack.c.l.b16 %v849
      %v883 = vunpack.c.l.b16 %v850
      %v884 = vunpack.c.l.b16 %v851
      %v885 = vunpack.c.l.b16 %v852
      %v886 = vunpack.c.l.b16 %v853
      %v887 = vunpack.c.l.b16 %v854
      %v888 = vunpack.c.l.b16 %v855
      %v889 = vunpack.c.l.b16 %v856
      %v890 = vunpack.c.l.b16 %v857
      %v891 = vunpack.c.l.b16 %v858
      %v892 = vunpack.c.l.b16 %v859
      %v893 = vunpack.c.l.b16 %v860
      %v894 = vpack.c.b16 %v879, %v878
      %v895 = vpack.c.b16 %v881, %v880
      %v896 = vpack.c.b16 %v883, %v882
      %v897 = vpack.c.b16 %v885, %v884
      %v898 = vpack.c.b16 %v887, %v886
      %v899 = vpack.c.b16 %v889, %v888
      %v900 = vpack.c.b16 %v891, %v890
      %v901 = vpack.c.b16 %v893, %v892
      %910 = vmatprep.subr.bf16.mxu0 0
      %911 = vmatpush1.bf16.msra.mxu0 %v894
      %912 = vmatprep.subr.bf16.mxu0 0
      %913 = vmatpush1.bf16.msra.mxu0 %v895
      %914 = vmatprep.subr.bf16.mxu0 0
      %915 = vmatpush1.bf16.msra.mxu0 %v896
      %916 = vmatprep.subr.bf16.mxu0 0
      %917 = vmatpush1.bf16.msra.mxu0 %v897
      %918 = vmatprep.subr.bf16.mxu0 0
      %919 = vmatpush1.bf16.msra.mxu0 %v898
      %920 = vmatprep.subr.bf16.mxu0 0
      %921 = vmatpush1.bf16.msra.mxu0 %v899
      %922 = vmatprep.subr.bf16.mxu0 0
      %923 = vmatpush1.bf16.msra.mxu0 %v900
      %924 = vmatprep.subr.bf16.mxu0 0
      %925 = vmatpush1.bf16.msra.mxu0 %v901
      %926 = vmatprep.subr.bf16.mxu0 0
      %927 = vmatpush1.bf16.msra.mxu0 0
      %928 = vmatprep.subr.bf16.mxu0 0
      %929 = vmatpush1.bf16.msra.mxu0 0
      %930 = vmatprep.subr.bf16.mxu0 0
      %931 = vmatpush1.bf16.msra.mxu0 0
      %932 = vmatprep.subr.bf16.mxu0 0
      %933 = vmatpush1.bf16.msra.mxu0 0
      %934 = vmatprep.subr.bf16.mxu0 0
      %935 = vmatpush1.bf16.msra.mxu0 0
      %936 = vmatprep.subr.bf16.mxu0 0
      %937 = vmatpush1.bf16.msra.mxu0 0
      %938 = vmatprep.subr.bf16.mxu0 0
      %939 = vmatpush1.bf16.msra.mxu0 0
      %940 = vmatprep.subr.bf16.mxu0 0
      %941 = vmatpush1.bf16.msra.mxu0 0
      %942 = vmatprep.mubr.bf16.mxu0 0
      %943 = vmatmul.mubr.bf16.gmra.mrb[0].mxu0 %v843
      %v944 = vpop.f32.mrb[0].mxu0
      %v945 = vadd.f32 %v861, %v944
      %v946 = vpop.f32.mrb[0].mxu0
      %v947 = vpop.f32.mrb[0].mxu0
      %v948 = vpop.f32.mrb[0].mxu0
      %949 = vdwg.mxu0
      %950 = vrot.lane.b32.xlu0 %v812, 32
      %v951 = vpop.permute.xlu0 %950
      %954 = vrot.lane.b32.xlu0 %v567, 96
      %v955 = vpop.permute.xlu0 %954
      %v957 = vsel %vm584, %v945, %v951
      %v958 = vsel %vm615, %v957, %v955
      %vm959 = vcmask 850944
      %v960 = vsel %vm959, %v958, 0.0
      %961 = vst [vmem:[%s324] sm:$0x3] %v960
      %p962 = scmp.lt.s32.totalorder %s20, 3
      %s963 = scalar_select %p962, %s20, 3
      %s964 = smul.addr %s963, 2
      %s965 = scalar_lea.vmem %s9, %s964
      // Predicated region
      $region61: #{decoder_decode.1} parent=55 // pred_check
        %p966 = pneg %p232
      $region62: #{decoder_decode.1} parent=55 // pred_check_branch
        %968 = sbr.rel (%p966) target = $region64
      $region63: #{decoder_decode.1} parent=55 // pred_region
        _
      $region64: #{decoder_decode.1} parent=55 // pred_fallthru
        _
    $region56: #{decoder_decode.1} parent=5 // pred_fallthru
      _
    %p969 = scmp.le.s32.totalorder 2, %s15
    // Predicated region
    $region65: #{decoder_decode.1} parent=5 // pred_check
      %p970 = pneg %p969
    $region66: #{decoder_decode.1} parent=5 // pred_check_branch
      %972 = sbr.rel (%p970) target = $region68
    $region67: #{decoder_decode.1} parent=5 // pred_region
      %s973 = ssub.s32 %s15, 2
      // Predicated region
      $region69: #{decoder_decode.1} parent=67 // pred_check
        %p974 = pneg %p238
      $region70: #{decoder_decode.1} parent=67 // pred_check_branch
        %976 = sbr.rel (%p974) target = $region72
      $region71: #{decoder_decode.1} parent=67 // pred_region
        %p977 = scmp.lt.s32.totalorder %s21, 3
        %s978 = scalar_select %p977, %s21, 3
        %s979 = smul.addr %s978, 2
        %s980 = scalar_lea.vmem %s9, %s979
      $region72: #{decoder_decode.1} parent=67 // pred_fallthru
        _
    $region68: #{decoder_decode.1} parent=5 // pred_fallthru
      _
  $region6: #{decoder_decode.1} parent=0 // loop_footer
    %s19 = sadd.s32 1, %s15
  $region7: #{decoder_decode.1} parent=0 // loop_footer_branch
    %14 = sbr.rel target = $region3
  $region8: #{decoder_decode.1} parent=0 // loop_exit
    _

</llo_original>
